<compile_context>
chip_gen: v5e
topology: v5e:2x2
jax: 0.10.0
libtpu: 0.0.40
codegen_flags: <defaults>
</compile_context>

<pallas_src>
import math

import jax
import jax.numpy as jnp
from jax.experimental import pallas as pl
from jax.experimental.pallas import tpu as pltpu


def _round_up(x, m):
    return (x + m - 1) // m * m


# ---------------------------------------------------------------------------
# Kernels
# ---------------------------------------------------------------------------
def _dense_small_kernel(x_ref, w_ref, b_ref, o_ref):
    """Whole-K single block: out = x @ w + b, bias fused into the store."""
    o_ref[...] = (jnp.dot(x_ref[...].astype(jnp.bfloat16), w_ref[...],
                          preferred_element_type=jnp.float32)
                  + b_ref[...]).astype(o_ref.dtype)


def _dense_tiled_kernel(x_ref, w_ref, b_ref, o_ref):
    """(tm, tn) output tile; K is the reduction grid axis (axis 2).

    The fp32 output tile doubles as the accumulator (no scratch, no finalize
    copy); it is initialized with the broadcast bias on the first K step.
    """
    k = pl.program_id(2)

    @pl.when(k == 0)
    def _init():
        o_ref[...] = jnp.broadcast_to(b_ref[...], o_ref.shape)

    # fp32 x is packed to bf16 in-vreg (cheap VPU op, hidden under the MXU).
    o_ref[...] += jnp.dot(x_ref[...].astype(jnp.bfloat16), w_ref[...],
                          preferred_element_type=jnp.float32)


# ---------------------------------------------------------------------------
# Parameter prep (one-time; keeps per-call wrapper free of weight traffic)
# ---------------------------------------------------------------------------
def init_params(key, in_channels, out_channels):
    """fp32 reference params. w is stored pre-transposed: (K, N)."""
    kw, kb = jax.random.split(key)
    w = jax.random.normal(kw, (in_channels, out_channels),
                          jnp.float32) / math.sqrt(in_channels)
    b = 0.01 * jax.random.normal(kb, (out_channels,), jnp.float32)
    return {'w': w, 'b': b}


def prepare_params(params):
    """One-time pad + cast to the kernel-ready layout.

    w -> bf16 (Kp, Np) slab (lane-dense, MXU-ready), b -> fp32 (1, Np).
    Zero padding on K is exact; padding on N is trimmed after the kernel.
    """
    w = params['w']
    b = params['b']
    K, N = w.shape
    Kp = _round_up(K, 128)
    Np = _round_up(N, 128)
    w_pad = jnp.pad(w, ((0, Kp - K), (0, Np - N))).astype(jnp.bfloat16)
    b_pad = jnp.pad(b, (0, Np - N)).astype(jnp.float32).reshape(1, Np)
    return {'w': w_pad, 'b': b_pad, 'K': K, 'N': N}


def _pick_tk(Kp):
    """Largest multiple of 128 that divides Kp and is <= 2048."""
    q = Kp // 128
    best = 1
    for d in range(1, 17):
        if q % d == 0:
            best = d
    return 128 * best


# ---------------------------------------------------------------------------
# Forward
# ---------------------------------------------------------------------------
def dense_forward(prepared, x):
    """PyTorch Dense.forward: self.dense(x)[..., None, None].

    prepared: output of prepare_params (padded bf16 weight, fp32 bias)
    x       : (..., in_channels) float32
    returns : (..., out_channels, 1, 1) float32
    """
    wb = prepared['w']            # (Kp, Np) bf16
    bb = prepared['b']            # (1, Np)  fp32
    K, N = prepared['K'], prepared['N']
    Kp, Np = wb.shape
    assert x.shape[-1] == K
    lead = x.shape[:-1]
    M = int(math.prod(lead)) if lead else 1
    x2 = x.reshape(M, K).astype(jnp.float32)

    # ---- small / latency-bound fast path (the actual ScoreSDE case) -------
    if M <= 256 and Kp <= 2048:
        Mp = _round_up(M, 8)
        if Mp != M or Kp != K:
            x2 = jnp.pad(x2, ((0, Mp - M), (0, Kp - K)))
        tn = 128                                   # lets 2 TCs split N on v7x
        grid = (Np // tn,)
        cost = pl.CostEstimate(
            flops=2 * Mp * Kp * Np, transcendentals=0,
            bytes_accessed=Mp * Kp * 4 + Kp * Np * 2 + Np * 4 + Mp * Np * 4)
        out = pl.pallas_call(
            _dense_small_kernel,
            out_shape=jax.ShapeDtypeStruct((Mp, Np), jnp.float32),
            grid=grid,
            in_specs=[pl.BlockSpec((Mp, Kp), lambda j: (0, 0)),
                      pl.BlockSpec((Kp, tn), lambda j: (0, j)),
                      pl.BlockSpec((1, tn), lambda j: (0, j))],
            out_specs=pl.BlockSpec((Mp, tn), lambda j: (0, j)),
            compiler_params=pltpu.CompilerParams(
                dimension_semantics=("parallel",)),
            cost_estimate=cost,
        )(x2, wb, bb)

    # ---- general tiled path ------------------------------------------------
    else:
        tm = min(256, _round_up(M, 8))
        Mp = _round_up(M, tm)
        tn = 256 if (Np % 256 == 0 and Np >= 512) else 128
        tk = _pick_tk(Kp)
        if Mp != M or Kp != K:
            x2 = jnp.pad(x2, ((0, Mp - M), (0, Kp - K)))
        grid = (Mp // tm, Np // tn, Kp // tk)
        cost = pl.CostEstimate(
            flops=2 * Mp * Kp * Np, transcendentals=0,
            bytes_accessed=Mp * Kp * 4 + Kp * Np * 2 + Np * 4 + Mp * Np * 4)
        out = pl.pallas_call(
            _dense_tiled_kernel,
            out_shape=jax.ShapeDtypeStruct((Mp, Np), jnp.float32),
            grid=grid,
            in_specs=[pl.BlockSpec((tm, tk), lambda i, j, k: (i, k)),
                      pl.BlockSpec((tk, tn), lambda i, j, k: (k, j)),
                      pl.BlockSpec((1, tn), lambda i, j, k: (0, j))],
            out_specs=pl.BlockSpec((tm, tn), lambda i, j, k: (i, j)),
            compiler_params=pltpu.CompilerParams(
                dimension_semantics=("parallel", "parallel", "arbitrary")),
            cost_estimate=cost,
        )(x2, wb, bb)

    # Trim alignment padding only when it was actually added.
    if out.shape != (M, N):
        out = out[:M, :N]
    return out.reshape(*lead, N, 1, 1)


# ---------------------------------------------------------------------------
if __name__ == "__main__":
    key = jax.random.PRNGKey(0)
    kp_, kx = jax.random.split(key)

    # ScoreSDE usage: x is the (batch, embed_dim) time embedding; output is a
    # per-channel bias of shape (batch, C, 1, 1).
    batch, in_channels, out_channels = 2, 256, 128
    params = init_params(kp_, in_channels, out_channels)
    prepared = prepare_params(params)          # one-time pad + bf16 cast

    x = jax.random.normal(kx, (batch, in_channels), jnp.float32)
    out = jax.block_until_ready(dense_forward(prepared, x))
    assert out.shape == (batch, out_channels, 1, 1), out.shape
    assert bool(jnp.all(jnp.isfinite(out)))
    ref = (x @ params['w'] + params['b'])[..., None, None]
    assert bool(jnp.allclose(out, ref, atol=5e-2, rtol=5e-2)), (
        float(jnp.max(jnp.abs(out - ref))))

    # Coverage: unaligned K/N/M (exercises padding + output trim, fast path).
    p2 = init_params(jax.random.PRNGKey(1), 40, 72)
    prep2 = prepare_params(p2)
    x2 = jax.random.normal(jax.random.PRNGKey(2), (3, 40), jnp.float32)
    o2 = jax.block_until_ready(dense_forward(prep2, x2))
    r2 = (x2 @ p2['w'] + p2['b'])[..., None, None]
    assert o2.shape == (3, 72, 1, 1), o2.shape
    assert bool(jnp.allclose(o2, r2, atol=5e-2, rtol=5e-2)), (
        float(jnp.max(jnp.abs(o2 - r2))))

    # Coverage: tiled path (M > 256, multiple K grid steps with bias init).
    p3 = init_params(jax.random.PRNGKey(3), 2560, 128)
    prep3 = prepare_params(p3)
    x3 = jax.random.normal(jax.random.PRNGKey(4), (320, 2560), jnp.float32)
    o3 = jax.block_until_ready(dense_forward(prep3, x3))
    r3 = (x3 @ p3['w'] + p3['b'])[..., None, None]
    assert o3.shape == (320, 128, 1, 1), o3.shape
    assert bool(jnp.allclose(o3, r3, atol=1e-1, rtol=5e-2)), (
        float(jnp.max(jnp.abs(o3 - r3))))

    print("KERNEL_OK")
</pallas_src>

<mosaic_0001>
module attributes {stable_mosaic.version = 11 : i64} {
  func.func @_dense_small_kernel(%arg0: i32, %arg1: memref<8x256xf32, #tpu.memory_space<vmem>>, %arg2: memref<256x128xbf16, #tpu.memory_space<vmem>>, %arg3: memref<1x128xf32, #tpu.memory_space<vmem>>, %arg4: memref<8x128xf32, #tpu.memory_space<vmem>>) attributes {dimension_semantics = [#tpu.dimension_semantics<parallel>], iteration_bounds = array<i64: 1>, scalar_prefetch = 0 : i64, scratch_operands = 0 : i64, tpu.core_type = #tpu.core_type<tc>, window_params = [{pipeline_mode = #tpu.pipeline_mode<synchronous>, transform_indices = @transform_0, window_bounds = array<i64: 8, 256>}, {transform_indices = @transform_1, window_bounds = array<i64: 256, 128>}, {transform_indices = @transform_2, window_bounds = array<i64: 1, 128>}, {transform_indices = @transform_3, window_bounds = array<i64: 8, 128>}]} {
    %c0 = arith.constant 0 : index
    %c0_0 = arith.constant 0 : index
    %0 = vector.load %arg1[%c0, %c0_0] : memref<8x256xf32, #tpu.memory_space<vmem>>, vector<8x256xf32>
    %1 = arith.truncf %0 : vector<8x256xf32> to vector<8x256xbf16>
    %c0_1 = arith.constant 0 : index
    %c0_2 = arith.constant 0 : index
    %2 = vector.load %arg2[%c0_1, %c0_2] : memref<256x128xbf16, #tpu.memory_space<vmem>>, vector<256x128xbf16>
    %cst = arith.constant dense<0.000000e+00> : vector<8x128xf32>
    %3 = tpu.matmul %1, %2, %cst {dimension_numbers = #tpu.dot_dimension_numbers<[1], [0], [0], [1], [0, 0, 1, 1], [], []>} : vector<8x256xbf16>, vector<256x128xbf16>, vector<8x128xf32> -> vector<8x128xf32>
    %c0_3 = arith.constant 0 : index
    %c0_4 = arith.constant 0 : index
    %4 = vector.load %arg3[%c0_3, %c0_4] : memref<1x128xf32, #tpu.memory_space<vmem>>, vector<1x128xf32>
    %5 = vector.broadcast %4 : vector<1x128xf32> to vector<8x128xf32>
    %6 = arith.addf %3, %5 : vector<8x128xf32>
    %c0_5 = arith.constant 0 : index
    %c0_6 = arith.constant 0 : index
    %7 = vector.load %arg4[%c0_5, %c0_6] : memref<8x128xf32, #tpu.memory_space<vmem>>, vector<8x128xf32>
    tpu.vector_store %arg4[%c0_5, %c0_6], %6 {strides = array<i32>} : memref<8x128xf32, #tpu.memory_space<vmem>>, vector<8x128xf32>,
    return
  }
  func.func @transform_0(%arg0: i32) -> (i32, i32) {
    %c0_i32 = arith.constant 0 : i32
    %c0_i32_0 = arith.constant 0 : i32
    %c0_i32_1 = arith.constant 0 : i32
    return %c0_i32, %c0_i32_0 : i32, i32
  }
  func.func @transform_1(%arg0: i32) -> (i32, i32) {
    %c0_i32 = arith.constant 0 : i32
    %c0_i32_0 = arith.constant 0 : i32
    return %c0_i32, %arg0 : i32, i32
  }
  func.func @transform_2(%arg0: i32) -> (i32, i32) {
    %c0_i32 = arith.constant 0 : i32
    %c0_i32_0 = arith.constant 0 : i32
    return %c0_i32, %arg0 : i32, i32
  }
  func.func @transform_3(%arg0: i32) -> (i32, i32) {
    %c0_i32 = arith.constant 0 : i32
    %c0_i32_0 = arith.constant 0 : i32
    return %c0_i32, %arg0 : i32, i32
  }
}

</mosaic_0001>

<llo_original>
// kernel: tpu_custom_call.1
$region0: #{tpu_custom_call.1}
  #allocation0 [shape = 'u32[]', space=smem, size = 0x4, offset = 0x4, fixed_abs, tag = 'smem constant byte address 0x4 - core index']
  #allocation1 [shape = 'u32[72,128]{1,0:T(1,128)}', space=vmem, size = 0x9000, scoped, tag = 'internal scratch']
  %s0 = inlined_call_operand.hbm [shape: f32[8,256], index: 0, kind: input, shape index: {}]
  %s1 = inlined_call_operand.hbm [shape: bf16[256,128], index: 1, kind: input, shape index: {}]
  %s2 = inlined_call_operand.vmem [shape: f32[1,128], index: 2, kind: input, shape index: {}]
  %s3 = inlined_call_operand.hbm [shape: f32[8,128], index: 3, kind: output, shape index: {}]
  %s4 = sld [smem:[#allocation0]]
  $region30: #{tpu_custom_call.1} parent=0
    _
  %s6 = ssub.s32 1, %s4
  %s7 = scalar_select 0, %s6, %s4
  $region1: #{tpu_custom_call.1} parent=0
    #allocation2 [shape = 'u8[8192]{0}', space=vmem, size = 0x2000, scoped, tag = 'input window, operand 0, single buffered']
    #allocation3 [shape = 's32[1]{0}', space=sflag, size = 0x4, scoped, tag = 'scoped memory for tpu_custom_call.1']
    #allocation4 [shape = 's32[1]{0}', space=sflag, size = 0x4, scoped, tag = 'scoped memory for tpu_custom_call.1']
    #allocation5 [shape = 'u8[65536]{0}', space=vmem, size = 0x10000, scoped, tag = 'input window, operand 1, single buffered']
    #allocation6 [shape = 's32[1]{0}', space=sflag, size = 0x4, scoped, tag = 'scoped memory for tpu_custom_call.1']
    #allocation7 [shape = 'u8[4096]{0}', space=vmem, size = 0x1000, scoped, tag = 'output window, operand 0, single buffered']
    %8 = vsyncpa [#allocation3], 0
    %9 = vsyncpa [#allocation6], 0
    %10 = vsyncpa [#allocation4], 0
    // Predicated region
    $region2: #{tpu_custom_call.1} parent=1 // pred_check
      _
    $region3: #{tpu_custom_call.1} parent=1 // pred_check_branch
      %12 = sbr.rel (0) target = $region5
    $region4: #{tpu_custom_call.1} parent=1 // pred_region
      %14 = vsyncadd [#allocation3], 0
      %s16 = sshll.u32 %s0, 4
      %s17 = int_to_ptr.hbm [resolvable:$true] %s16
      %s18 = sshll.u32 [#allocation2], 4
      %s19 = int_to_ptr.vmem [resolvable:$true] %s18
      %21 = dma.hbm_to_vmem [thread:$0]  %s17, 256, %s19, [#allocation3]
    $region5: #{tpu_custom_call.1} parent=1 // pred_fallthru
      _
    // Predicated region
    $region6: #{tpu_custom_call.1} parent=1 // pred_check
      _
    $region7: #{tpu_custom_call.1} parent=1 // pred_check_branch
      %23 = sbr.rel (0) target = $region9
    $region8: #{tpu_custom_call.1} parent=1 // pred_region
      %25 = vsyncadd [#allocation6], 0
      %s26 = sshll.u32 %s1, 4
      %s27 = int_to_ptr.hbm [resolvable:$true] %s26
      %s28 = sshll.u32 [#allocation5], 4
      %s29 = int_to_ptr.vmem [resolvable:$true] %s28
      %34 = dma.hbm_to_vmem [thread:$0]  %s27, 2048, %s29, [#allocation6], 64, 64, 4
    $region9: #{tpu_custom_call.1} parent=1 // pred_fallthru
      _
    // Predicated region
    $region10: #{tpu_custom_call.1} parent=1 // pred_check
      _
    $region11: #{tpu_custom_call.1} parent=1 // pred_check_branch
      %36 = sbr.rel (0) target = $region13
    $region12: #{tpu_custom_call.1} parent=1 // pred_region
      _
    $region13: #{tpu_custom_call.1} parent=1 // pred_fallthru
      _
    // Predicated region
    $region14: #{tpu_custom_call.1} parent=1 // pred_check
      _
    $region15: #{tpu_custom_call.1} parent=1 // pred_check_branch
      %38 = sbr.rel (0) target = $region17
    $region16: #{tpu_custom_call.1} parent=1 // pred_region
      %40 = dma.done [#allocation3], 256
    $region17: #{tpu_custom_call.1} parent=1 // pred_fallthru
      _
    // Predicated region
    $region18: #{tpu_custom_call.1} parent=1 // pred_check
      _
    $region19: #{tpu_custom_call.1} parent=1 // pred_check_branch
      %42 = sbr.rel (0) target = $region21
    $region20: #{tpu_custom_call.1} parent=1 // pred_region
      %44 = dma.done [#allocation6], 2048
    $region21: #{tpu_custom_call.1} parent=1 // pred_fallthru
      _
    %v45 = vld [vmem:[#allocation2] sm:$0xff]
    %v46 = vld [vmem:[#allocation2 + $0x8] sm:$0xff]
    %v47 = vpack.c.bf16 %v45, %v45
    %v48 = vpack.c.bf16 %v46, %v46
    %v49 = vld [vmem:[#allocation5] sm:$0xf]
    %v50 = vld [vmem:[#allocation5 + $0x4] sm:$0xf]
    %v51 = vld [vmem:[#allocation5 + $0x8] sm:$0xf]
    %v52 = vld [vmem:[#allocation5 + $0xc] sm:$0xf]
    %v53 = vld [vmem:[#allocation5 + $0x10] sm:$0xf]
    %v54 = vld [vmem:[#allocation5 + $0x14] sm:$0xf]
    %v55 = vld [vmem:[#allocation5 + $0x18] sm:$0xf]
    %v56 = vld [vmem:[#allocation5 + $0x1c] sm:$0xf]
    %v57 = vld [vmem:[#allocation5 + $0x20] sm:$0xf]
    %v58 = vld [vmem:[#allocation5 + $0x24] sm:$0xf]
    %v59 = vld [vmem:[#allocation5 + $0x28] sm:$0xf]
    %v60 = vld [vmem:[#allocation5 + $0x2c] sm:$0xf]
    %v61 = vld [vmem:[#allocation5 + $0x30] sm:$0xf]
    %v62 = vld [vmem:[#allocation5 + $0x34] sm:$0xf]
    %v63 = vld [vmem:[#allocation5 + $0x38] sm:$0xf]
    %v64 = vld [vmem:[#allocation5 + $0x3c] sm:$0xf]
    %v65 = vld [vmem:[#allocation5 + $0x40] sm:$0xf]
    %v66 = vld [vmem:[#allocation5 + $0x44] sm:$0xf]
    %v67 = vld [vmem:[#allocation5 + $0x48] sm:$0xf]
    %v68 = vld [vmem:[#allocation5 + $0x4c] sm:$0xf]
    %v69 = vld [vmem:[#allocation5 + $0x50] sm:$0xf]
    %v70 = vld [vmem:[#allocation5 + $0x54] sm:$0xf]
    %v71 = vld [vmem:[#allocation5 + $0x58] sm:$0xf]
    %v72 = vld [vmem:[#allocation5 + $0x5c] sm:$0xf]
    %v73 = vld [vmem:[#allocation5 + $0x60] sm:$0xf]
    %v74 = vld [vmem:[#allocation5 + $0x64] sm:$0xf]
    %v75 = vld [vmem:[#allocation5 + $0x68] sm:$0xf]
    %v76 = vld [vmem:[#allocation5 + $0x6c] sm:$0xf]
    %v77 = vld [vmem:[#allocation5 + $0x70] sm:$0xf]
    %v78 = vld [vmem:[#allocation5 + $0x74] sm:$0xf]
    %v79 = vld [vmem:[#allocation5 + $0x78] sm:$0xf]
    %v80 = vld [vmem:[#allocation5 + $0x7c] sm:$0xf]
    %v81 = vld [vmem:[%s2] sm:$0x1]
    %v83 = vperm.slane %v81, 0
    %v117 = vunpack.c.l.b16 %v49
    %v118 = vunpack.c.l.b16 %v50
    %v119 = vunpack.c.l.b16 %v51
    %v120 = vunpack.c.l.b16 %v52
    %v121 = vunpack.c.l.b16 %v53
    %v122 = vunpack.c.l.b16 %v54
    %v123 = vunpack.c.l.b16 %v55
    %v124 = vunpack.c.l.b16 %v56
    %v125 = vunpack.c.l.b16 %v57
    %v126 = vunpack.c.l.b16 %v58
    %v127 = vunpack.c.l.b16 %v59
    %v128 = vunpack.c.l.b16 %v60
    %v129 = vunpack.c.l.b16 %v61
    %v130 = vunpack.c.l.b16 %v62
    %v131 = vunpack.c.l.b16 %v63
    %v132 = vunpack.c.l.b16 %v64
    %v133 = vunpack.c.l.b16 %v65
    %v134 = vunpack.c.l.b16 %v66
    %v135 = vunpack.c.l.b16 %v67
    %v136 = vunpack.c.l.b16 %v68
    %v137 = vunpack.c.l.b16 %v69
    %v138 = vunpack.c.l.b16 %v70
    %v139 = vunpack.c.l.b16 %v71
    %v140 = vunpack.c.l.b16 %v72
    %v141 = vunpack.c.l.b16 %v73
    %v142 = vunpack.c.l.b16 %v74
    %v143 = vunpack.c.l.b16 %v75
    %v144 = vunpack.c.l.b16 %v76
    %v145 = vunpack.c.l.b16 %v77
    %v146 = vunpack.c.l.b16 %v78
    %v147 = vunpack.c.l.b16 %v79
    %v148 = vunpack.c.l.b16 %v80
    %v149 = vpack.c.b16 %v118, %v117
    %v150 = vpack.c.b16 %v120, %v119
    %v151 = vpack.c.b16 %v122, %v121
    %v152 = vpack.c.b16 %v124, %v123
    %v153 = vpack.c.b16 %v126, %v125
    %v154 = vpack.c.b16 %v128, %v127
    %v155 = vpack.c.b16 %v130, %v129
    %v156 = vpack.c.b16 %v132, %v131
    %v157 = vpack.c.b16 %v134, %v133
    %v158 = vpack.c.b16 %v136, %v135
    %v159 = vpack.c.b16 %v138, %v137
    %v160 = vpack.c.b16 %v140, %v139
    %v161 = vpack.c.b16 %v142, %v141
    %v162 = vpack.c.b16 %v144, %v143
    %v163 = vpack.c.b16 %v146, %v145
    %v164 = vpack.c.b16 %v148, %v147
    %181 = vmatpush.bf16.msra.mxu0 %v156
    %182 = vmatpush.bf16.msra.mxu0 %v155
    %183 = vmatpush.bf16.msra.mxu0 %v154
    %184 = vmatpush.bf16.msra.mxu0 %v153
    %185 = vmatpush.bf16.msra.mxu0 %v152
    %186 = vmatpush.bf16.msra.mxu0 %v151
    %187 = vmatpush.bf16.msra.mxu0 %v150
    %188 = vmatpush.bf16.msra.mxu0 %v149
    %189 = vmatmul.bf16.gmra.mxu0 %v47
    %v190 = vpop.f32.mrf.mxu0
    %v191 = vadd.f32 %v83, %v190
    %v192 = vpop.f32.mrf.mxu0
    %193 = vdwg.mxu0
    %194 = vmatpush.bf16.msra.mxu0 %v164
    %195 = vmatpush.bf16.msra.mxu0 %v163
    %196 = vmatpush.bf16.msra.mxu0 %v162
    %197 = vmatpush.bf16.msra.mxu0 %v161
    %198 = vmatpush.bf16.msra.mxu0 %v160
    %199 = vmatpush.bf16.msra.mxu0 %v159
    %200 = vmatpush.bf16.msra.mxu0 %v158
    %201 = vmatpush.bf16.msra.mxu0 %v157
    %202 = vmatmul.bf16.gmra.mxu0 %v48
    %v203 = vpop.f32.mrf.mxu0
    %v204 = vadd.f32 %v191, %v203
    %v205 = vpop.f32.mrf.mxu0
    %206 = vdwg.mxu0
    %207 = vst [vmem:[#allocation7] sm:$0xff] %v204
    // Predicated region
    $region22: #{tpu_custom_call.1} parent=1 // pred_check
      _
    $region23: #{tpu_custom_call.1} parent=1 // pred_check_branch
      %209 = sbr.rel (0) target = $region25
    $region24: #{tpu_custom_call.1} parent=1 // pred_region
      %211 = vsyncadd [#allocation4], 0
      %s213 = sshll.u32 [#allocation7], 4
      %s214 = int_to_ptr.vmem [resolvable:$true] %s213
      %s215 = sshll.u32 %s3, 4
      %s216 = int_to_ptr.hbm [resolvable:$true] %s215
      %218 = dma.vmem_to_hbm [thread:$0]  %s214, 128, %s216, [#allocation4]
    $region25: #{tpu_custom_call.1} parent=1 // pred_fallthru
      _
    // Predicated region
    $region26: #{tpu_custom_call.1} parent=1 // pred_check
      _
    $region27: #{tpu_custom_call.1} parent=1 // pred_check_branch
      %220 = sbr.rel (0) target = $region29
    $region28: #{tpu_custom_call.1} parent=1 // pred_region
      %222 = dma.done [#allocation4], 128
    $region29: #{tpu_custom_call.1} parent=1 // pred_fallthru
      _
    %223 = vsyncpa [#allocation3], 1
    %224 = vsyncpa [#allocation6], 1
    %225 = vsyncpa [#allocation4], 1

</llo_original>
